<compile_context>
chip_gen: v7x
topology: tpu7x:2x2x1
jax: 0.10.0
libtpu: 0.0.40
codegen_flags: <defaults>
</compile_context>

<pallas_src>
import numpy as np
import jax
import jax.numpy as jnp
from jax.experimental import pallas as pl
from jax.experimental.pallas import tpu as pltpu


def _tree_sum(terms):
    """Pairwise sum: cuts the dependent-add chain from len(terms) to ceil(log2)."""
    while len(terms) > 1:
        nxt = [terms[i] + terms[i + 1] for i in range(0, len(terms) - 1, 2)]
        if len(terms) % 2:
            nxt.append(terms[-1])
        terms = nxt
    return terms[0]


def shblock_kernel(x_ref, slab_ref, phif_ref, phii_ref, o_ref):
    x = x_ref[...]                                   # (C, HW) f32, lane-dense
    C, HW = x.shape
    C2 = C // 2
    K = phii_ref.shape[0]

    s = slab_ref[...]                                # (C + C2*C2, 128) packed params
    gamma = s[0:C, 0:1]                              # (C, 1)
    beta = s[0:C, 1:2]                               # (C, 1)
    b_out = s[0:C, 2:3]                              # (C, 1)
    b_in = s[0:C2, 3:4]                              # (C2, 1)
    w_in = s[0:C2, 8:8 + C]                          # (C2, C)
    w_out = s[0:C, 16:16 + C2]                       # (C, C2)

    # --- LayerNorm over channels (torch LayerNorm(num_channel), eps=1e-5) ---
    # Channels sit on sublanes; mean and E[x^2] reductions are independent.
    mu = jnp.mean(x, axis=0, keepdims=True)          # (1, HW)
    ex2 = jnp.mean(x * x, axis=0, keepdims=True)     # (1, HW)
    var = ex2 - mu * mu
    xn = (x - mu) * jax.lax.rsqrt(var + 1e-5) * gamma + beta

    # --- SiLU (logistic -> EUP slot) + dropout (eval: identity) ---
    a = xn * jax.nn.sigmoid(xn)

    # --- in_conv (1x1, C -> C/2): tiny matmul on the otherwise-idle MXU ---
    y = jnp.dot(w_in, a, preferred_element_type=jnp.float32) + b_in       # (C2, HW)
    y = y * jax.nn.sigmoid(y)

    # --- grid_to_sh: synthetic dense forward SHT, bf16 basis, f32 accumulate ---
    coeffs = jnp.dot(y.astype(jnp.bfloat16), phif_ref[...],
                     preferred_element_type=jnp.float32)                  # (C2, K)

    # --- SHConv: per-degree channel mixing, lane-dense VPU FMAs, tree-summed ---
    # mixed[i, k] = sum_j wsh[j, i, k] * coeffs[j, k]; slab rows packed as j*C2 + i.
    terms = []
    for j in range(C2):
        w_j = s[C + j * C2: C + (j + 1) * C2, 0:K]   # (C2_i, K)
        terms.append(w_j * coeffs[j:j + 1, :])
    mixed = _tree_sum(terms)                         # (C2, K)

    # --- sh_to_grid: synthetic dense inverse SHT, bf16 basis, f32 accumulate ---
    z = jnp.dot(mixed.astype(jnp.bfloat16), phii_ref[...],
                preferred_element_type=jnp.float32)                       # (C2, HW)

    # --- SiLU + dropout (identity) + out_conv (1x1, C/2 -> C) on the MXU ---
    z = z * jax.nn.sigmoid(z)
    out = jnp.dot(w_out, z, preferred_element_type=jnp.float32) + b_out   # (C, HW)

    # --- residual; (C, HW) store is full-width / unmasked and aliases x's buffer ---
    o_ref[...] = x + out


def make_params(key, C, H, W, lmax, sht_batch):
    C2 = C // 2
    assert C2 % sht_batch == 0          # mirrors the module's reshape((-1, sht.batch_size, ...))
    K = (lmax + 1) ** 2
    HW = H * W
    assert K <= 128 and 8 + C <= 128 and 16 + C2 <= 128
    ks = jax.random.split(key, 7)

    # LayerNorm affine (torch default init).
    gamma = np.ones((C,), np.float32)
    beta = np.zeros((C,), np.float32)

    # 1x1 conv weights as (out, in) matrices for the in-kernel MXU dots.
    w_in = np.asarray(jax.random.normal(ks[0], (C2, C)) / np.sqrt(C), np.float32)
    b_in = np.asarray(0.01 * jax.random.normal(ks[1], (C2,)), np.float32)
    w_out = np.asarray(jax.random.normal(ks[2], (C, C2)) / np.sqrt(C2), np.float32)
    b_out = np.asarray(0.01 * jax.random.normal(ks[3], (C,)), np.float32)

    # Synthetic SHT basis matrices, built in the (W, H)-flattened order the torch module
    # feeds grid_to_sh, then row-permuted so the kernel consumes the (H, W)-flattened
    # (lane-axis) activations.  Stored pre-transposed for the (C, HW) layout and in bf16
    # (they feed the MXU; accumulation stays f32).
    phi_fwd_wh = np.asarray(jax.random.normal(ks[4], (W * H, K)) / np.sqrt(W * H), np.float32)
    phi_inv_wh = np.asarray(jax.random.normal(ks[5], (K, W * H)) / np.sqrt(K), np.float32)
    p = np.arange(HW)
    perm = (p % W) * H + (p // W)               # lane h*W+w pulls from source index w*H+h
    phif = jnp.asarray(phi_fwd_wh[perm], jnp.bfloat16)      # (HW, K)
    phii = jnp.asarray(phi_inv_wh[:, perm], jnp.bfloat16)   # (K, HW)

    # SHConv: one (C2, C2) channel-mixing matrix per degree l, expanded per coefficient
    # (l, m) and re-ordered so wsh[j, i, k] = W_{deg(k)}[i, j].
    wl = np.asarray(jax.random.normal(ks[6], (lmax + 1, C2, C2)) / np.sqrt(C2), np.float32)
    degrees = np.repeat(np.arange(lmax + 1), 2 * np.arange(lmax + 1) + 1)   # (K,)
    wsh = np.transpose(wl[degrees], (2, 1, 0))   # (C2_j, C2_i, K)

    # Pack every small parameter into one lane-aligned slab: one DMA instead of eight,
    # and no (., ., 1)-shaped arrays left to tile-pad.
    slab = np.zeros((C + C2 * C2, 128), np.float32)
    slab[0:C, 0] = gamma
    slab[0:C, 1] = beta
    slab[0:C, 2] = b_out
    slab[0:C2, 3] = b_in
    slab[0:C2, 8:8 + C] = w_in
    slab[0:C, 16:16 + C2] = w_out
    slab[C:C + C2 * C2, 0:K] = wsh.reshape(C2 * C2, K)

    return dict(slab=jnp.asarray(slab), phif=phif, phii=phii)


@jax.jit
def sh_block_forward(x_nchw, params):
    N, C, H, W = x_nchw.shape
    assert N == 1, "SHBlock.forward is only well-defined for batch size 1"
    # NCHW with N=1 is already channel-major: (1, C, H, W) -> (C, H*W) is a free reshape.
    x_chw = x_nchw.reshape(C, H * W)

    vmem = lambda: pl.BlockSpec(memory_space=pltpu.MemorySpace.VMEM)
    out_chw = pl.pallas_call(
        shblock_kernel,
        out_shape=jax.ShapeDtypeStruct((C, H * W), jnp.float32),
        in_specs=[vmem(), vmem(), vmem(), vmem()],
        out_specs=vmem(),
        input_output_aliases={0: 0},      # residual output reuses x's buffer
    )(x_chw, params["slab"], params["phif"], params["phii"])

    # (C, H*W) -> NCHW, again a free reshape.
    return out_chw.reshape(1, C, H, W)


if __name__ == "__main__":
    C, H, W = 8, 16, 16          # num_channel=8, spherical grid 16x16
    lmax, sht_batch = 7, 2       # K = (lmax+1)^2 = 64 SH coefficients
    key = jax.random.PRNGKey(0)
    kx, kp = jax.random.split(key)

    x = jax.random.normal(kx, (1, C, H, W), jnp.float32)
    params = make_params(kp, C, H, W, lmax, sht_batch)

    out = sh_block_forward(x, params)
    jax.block_until_ready(out)
    assert out.shape == x.shape and out.dtype == jnp.float32
    print("KERNEL_OK")
</pallas_src>

<mosaic_0001>
module attributes {stable_mosaic.version = 11 : i64} {
  func.func @shblock_kernel(%arg0: memref<8x256xf32, #tpu.memory_space<vmem>>, %arg1: memref<24x128xf32, #tpu.memory_space<vmem>>, %arg2: memref<256x64xbf16, #tpu.memory_space<vmem>>, %arg3: memref<64x256xbf16, #tpu.memory_space<vmem>>, %arg4: memref<8x256xf32, #tpu.memory_space<vmem>>) attributes {dimension_semantics = [], scalar_prefetch = 0 : i64, scratch_operands = 0 : i64, tpu.core_type = #tpu.core_type<tc>} {
    %c0 = arith.constant 0 : index
    %c0_0 = arith.constant 0 : index
    %0 = vector.load %arg0[%c0, %c0_0] : memref<8x256xf32, #tpu.memory_space<vmem>>, vector<8x256xf32>
    %c0_1 = arith.constant 0 : index
    %c0_2 = arith.constant 0 : index
    %1 = vector.load %arg1[%c0_1, %c0_2] : memref<24x128xf32, #tpu.memory_space<vmem>>, vector<24x128xf32>
    %2 = vector.extract_strided_slice %1 {offsets = [0, 0], sizes = [8, 1], strides = [1, 1]} : vector<24x128xf32> to vector<8x1xf32>
    %3 = vector.extract_strided_slice %1 {offsets = [0, 1], sizes = [8, 1], strides = [1, 1]} : vector<24x128xf32> to vector<8x1xf32>
    %4 = vector.extract_strided_slice %1 {offsets = [0, 2], sizes = [8, 1], strides = [1, 1]} : vector<24x128xf32> to vector<8x1xf32>
    %5 = vector.extract_strided_slice %1 {offsets = [0, 3], sizes = [4, 1], strides = [1, 1]} : vector<24x128xf32> to vector<4x1xf32>
    %6 = vector.extract_strided_slice %1 {offsets = [0, 8], sizes = [4, 8], strides = [1, 1]} : vector<24x128xf32> to vector<4x8xf32>
    %7 = vector.extract_strided_slice %1 {offsets = [0, 16], sizes = [8, 4], strides = [1, 1]} : vector<24x128xf32> to vector<8x4xf32>
    %cst = arith.constant dense<0.000000e+00> : vector<256xf32>
    %8 = vector.multi_reduction <add>, %0, %cst [0] : vector<8x256xf32> to vector<256xf32>
    %9 = vector.shape_cast %8 : vector<256xf32> to vector<1x256xf32>
    %cst_3 = arith.constant 8.000000e+00 : f32
    %10 = vector.broadcast %cst_3 : f32 to vector<1x256xf32>
    %11 = arith.divf %9, %10 : vector<1x256xf32>
    %12 = arith.mulf %0, %0 : vector<8x256xf32>
    %cst_4 = arith.constant dense<0.000000e+00> : vector<256xf32>
    %13 = vector.multi_reduction <add>, %12, %cst_4 [0] : vector<8x256xf32> to vector<256xf32>
    %14 = vector.shape_cast %13 : vector<256xf32> to vector<1x256xf32>
    %cst_5 = arith.constant 8.000000e+00 : f32
    %15 = vector.broadcast %cst_5 : f32 to vector<1x256xf32>
    %16 = arith.divf %14, %15 : vector<1x256xf32>
    %17 = arith.mulf %11, %11 : vector<1x256xf32>
    %18 = arith.subf %16, %17 : vector<1x256xf32>
    %19 = vector.broadcast %11 : vector<1x256xf32> to vector<8x256xf32>
    %20 = arith.subf %0, %19 : vector<8x256xf32>
    %cst_6 = arith.constant 9.99999974E-6 : f32
    %21 = vector.broadcast %cst_6 : f32 to vector<1x256xf32>
    %22 = arith.addf %18, %21 : vector<1x256xf32>
    %23 = math.rsqrt %22 : vector<1x256xf32>
    %24 = vector.broadcast %23 : vector<1x256xf32> to vector<8x256xf32>
    %25 = arith.mulf %20, %24 : vector<8x256xf32>
    %26 = vector.broadcast %2 : vector<8x1xf32> to vector<8x256xf32>
    %27 = arith.mulf %25, %26 : vector<8x256xf32>
    %28 = vector.broadcast %3 : vector<8x1xf32> to vector<8x256xf32>
    %29 = arith.addf %27, %28 : vector<8x256xf32>
    %30 = arith.negf %29 : vector<8x256xf32>
    %31 = math.exp %30 : vector<8x256xf32>
    %cst_7 = arith.constant 1.000000e+00 : f32
    %32 = vector.broadcast %cst_7 : f32 to vector<8x256xf32>
    %33 = arith.addf %32, %31 : vector<8x256xf32>
    %34 = arith.divf %32, %33 : vector<8x256xf32>
    %35 = arith.mulf %29, %34 : vector<8x256xf32>
    %cst_8 = arith.constant dense<0.000000e+00> : vector<4x256xf32>
    %36 = tpu.matmul %6, %35, %cst_8 {dimension_numbers = #tpu.dot_dimension_numbers<[1], [0], [0], [1], [0, 0, 1, 1], [], []>} : vector<4x8xf32>, vector<8x256xf32>, vector<4x256xf32> -> vector<4x256xf32>
    %37 = vector.broadcast %5 : vector<4x1xf32> to vector<4x256xf32>
    %38 = arith.addf %36, %37 : vector<4x256xf32>
    %39 = arith.negf %38 : vector<4x256xf32>
    %40 = math.exp %39 : vector<4x256xf32>
    %cst_9 = arith.constant 1.000000e+00 : f32
    %41 = vector.broadcast %cst_9 : f32 to vector<4x256xf32>
    %42 = arith.addf %41, %40 : vector<4x256xf32>
    %43 = arith.divf %41, %42 : vector<4x256xf32>
    %44 = arith.mulf %38, %43 : vector<4x256xf32>
    %45 = arith.truncf %44 : vector<4x256xf32> to vector<4x256xbf16>
    %c0_10 = arith.constant 0 : index
    %c0_11 = arith.constant 0 : index
    %46 = vector.load %arg2[%c0_10, %c0_11] : memref<256x64xbf16, #tpu.memory_space<vmem>>, vector<256x64xbf16>
    %cst_12 = arith.constant dense<0.000000e+00> : vector<4x64xf32>
    %47 = tpu.matmul %45, %46, %cst_12 {dimension_numbers = #tpu.dot_dimension_numbers<[1], [0], [0], [1], [0, 0, 1, 1], [], []>} : vector<4x256xbf16>, vector<256x64xbf16>, vector<4x64xf32> -> vector<4x64xf32>
    %48 = vector.extract_strided_slice %1 {offsets = [8, 0], sizes = [4, 64], strides = [1, 1]} : vector<24x128xf32> to vector<4x64xf32>
    %49 = vector.extract_strided_slice %47 {offsets = [0, 0], sizes = [1, 64], strides = [1, 1]} : vector<4x64xf32> to vector<1x64xf32>
    %50 = vector.broadcast %49 : vector<1x64xf32> to vector<4x64xf32>
    %51 = arith.mulf %48, %50 : vector<4x64xf32>
    %52 = vector.extract_strided_slice %1 {offsets = [12, 0], sizes = [4, 64], strides = [1, 1]} : vector<24x128xf32> to vector<4x64xf32>
    %53 = vector.extract_strided_slice %47 {offsets = [1, 0], sizes = [1, 64], strides = [1, 1]} : vector<4x64xf32> to vector<1x64xf32>
    %54 = vector.broadcast %53 : vector<1x64xf32> to vector<4x64xf32>
    %55 = arith.mulf %52, %54 : vector<4x64xf32>
    %56 = vector.extract_strided_slice %1 {offsets = [16, 0], sizes = [4, 64], strides = [1, 1]} : vector<24x128xf32> to vector<4x64xf32>
    %57 = vector.extract_strided_slice %47 {offsets = [2, 0], sizes = [1, 64], strides = [1, 1]} : vector<4x64xf32> to vector<1x64xf32>
    %58 = vector.broadcast %57 : vector<1x64xf32> to vector<4x64xf32>
    %59 = arith.mulf %56, %58 : vector<4x64xf32>
    %60 = vector.extract_strided_slice %1 {offsets = [20, 0], sizes = [4, 64], strides = [1, 1]} : vector<24x128xf32> to vector<4x64xf32>
    %61 = vector.extract_strided_slice %47 {offsets = [3, 0], sizes = [1, 64], strides = [1, 1]} : vector<4x64xf32> to vector<1x64xf32>
    %62 = vector.broadcast %61 : vector<1x64xf32> to vector<4x64xf32>
    %63 = arith.mulf %60, %62 : vector<4x64xf32>
    %64 = arith.addf %51, %55 : vector<4x64xf32>
    %65 = arith.addf %59, %63 : vector<4x64xf32>
    %66 = arith.addf %64, %65 : vector<4x64xf32>
    %67 = arith.truncf %66 : vector<4x64xf32> to vector<4x64xbf16>
    %c0_13 = arith.constant 0 : index
    %c0_14 = arith.constant 0 : index
    %68 = vector.load %arg3[%c0_13, %c0_14] : memref<64x256xbf16, #tpu.memory_space<vmem>>, vector<64x256xbf16>
    %cst_15 = arith.constant dense<0.000000e+00> : vector<4x256xf32>
    %69 = tpu.matmul %67, %68, %cst_15 {dimension_numbers = #tpu.dot_dimension_numbers<[1], [0], [0], [1], [0, 0, 1, 1], [], []>} : vector<4x64xbf16>, vector<64x256xbf16>, vector<4x256xf32> -> vector<4x256xf32>
    %70 = arith.negf %69 : vector<4x256xf32>
    %71 = math.exp %70 : vector<4x256xf32>
    %cst_16 = arith.constant 1.000000e+00 : f32
    %72 = vector.broadcast %cst_16 : f32 to vector<4x256xf32>
    %73 = arith.addf %72, %71 : vector<4x256xf32>
    %74 = arith.divf %72, %73 : vector<4x256xf32>
    %75 = arith.mulf %69, %74 : vector<4x256xf32>
    %cst_17 = arith.constant dense<0.000000e+00> : vector<8x256xf32>
    %76 = tpu.matmul %7, %75, %cst_17 {dimension_numbers = #tpu.dot_dimension_numbers<[1], [0], [0], [1], [0, 0, 1, 1], [], []>} : vector<8x4xf32>, vector<4x256xf32>, vector<8x256xf32> -> vector<8x256xf32>
    %77 = vector.broadcast %4 : vector<8x1xf32> to vector<8x256xf32>
    %78 = arith.addf %76, %77 : vector<8x256xf32>
    %79 = arith.addf %0, %78 : vector<8x256xf32>
    %c0_18 = arith.constant 0 : index
    %c0_19 = arith.constant 0 : index
    %80 = vector.load %arg4[%c0_18, %c0_19] : memref<8x256xf32, #tpu.memory_space<vmem>>, vector<8x256xf32>
    tpu.vector_store %arg4[%c0_18, %c0_19], %79 {strides = array<i32>} : memref<8x256xf32, #tpu.memory_space<vmem>>, vector<8x256xf32>,
    return
  }
}

</mosaic_0001>

<llo_original>
// kernel: sh_block_forward.1
$region0: #{sh_block_forward.1}
  #allocation0 [shape = 'u32[]', space=smem, size = 0x4, offset = 0x4, fixed_abs, tag = 'smem constant byte address 0x4 - core index']
  #allocation1 [shape = 'u32[144,128]{1,0:T(1,128)}', space=vmem, size = 0x12000, scoped, tag = 'internal scratch']
  %s0 = inlined_call_operand.vmem [shape: f32[8,256], index: 0, kind: input, shape index: {}, may-alias: {0,4}]
  %s1 = inlined_call_operand.vmem [shape: f32[24,128], index: 1, kind: input, shape index: {}]
  %s2 = inlined_call_operand.vmem [shape: bf16[256,64], index: 2, kind: input, shape index: {}]
  %s3 = inlined_call_operand.vmem [shape: bf16[64,256], index: 3, kind: input, shape index: {}]
  %s4 = inlined_call_operand.vmem [shape: f32[8,256], index: 4, kind: output, shape index: {}, may-alias: {0,4}]
  %s5 = sld [smem:[#allocation0]]
  $region26: #{sh_block_forward.1} parent=0
    _
  %s7 = ssub.s32 1, %s5
  %s8 = scalar_select 0, %s7, %s5
  // Predicated region
  $region2: #{sh_block_forward.1} parent=0 // pred_check
    _
  $region3: #{sh_block_forward.1} parent=0 // pred_check_branch
    %10 = sbr.rel (0) target = $region5
  $region4: #{sh_block_forward.1} parent=0 // pred_region
    _
  $region5: #{sh_block_forward.1} parent=0 // pred_fallthru
    _
  // Predicated region
  $region6: #{sh_block_forward.1} parent=0 // pred_check
    _
  $region7: #{sh_block_forward.1} parent=0 // pred_check_branch
    %12 = sbr.rel (0) target = $region9
  $region8: #{sh_block_forward.1} parent=0 // pred_region
    _
  $region9: #{sh_block_forward.1} parent=0 // pred_fallthru
    _
  // Predicated region
  $region10: #{sh_block_forward.1} parent=0 // pred_check
    _
  $region11: #{sh_block_forward.1} parent=0 // pred_check_branch
    %14 = sbr.rel (0) target = $region13
  $region12: #{sh_block_forward.1} parent=0 // pred_region
    _
  $region13: #{sh_block_forward.1} parent=0 // pred_fallthru
    _
  // Predicated region
  $region14: #{sh_block_forward.1} parent=0 // pred_check
    _
  $region15: #{sh_block_forward.1} parent=0 // pred_check_branch
    %16 = sbr.rel (0) target = $region17
  $region16: #{sh_block_forward.1} parent=0 // pred_region
    _
  $region17: #{sh_block_forward.1} parent=0 // pred_fallthru
    _
  %v18 = vld [vmem:[%s0] sm:$0xff]
  %v19 = vld [vmem:[%s0 + $0x8] sm:$0xff]
  %v20 = vld [vmem:[%s1] sm:$0xff]
  %v21 = vld [vmem:[%s1 + $0x8] sm:$0xff]
  %v22 = vld [vmem:[%s1 + $0x10] sm:$0xff]
  %v23 = vrot.slane %v18, 4
  %v24 = vadd.f32 %v18, %v23
  %v25 = vrot.slane %v24, 2
  %v26 = vadd.f32 %v24, %v25
  %v27 = vrot.slane %v26, 1
  %v28 = vadd.f32 %v26, %v27
  %v29 = vrot.slane %v19, 4
  %v30 = vadd.f32 %v19, %v29
  %v31 = vrot.slane %v30, 2
  %v32 = vadd.f32 %v30, %v31
  %v33 = vrot.slane %v32, 1
  %v34 = vadd.f32 %v32, %v33
  %v35 = vrcp.pop 8.0
  %v36 = vmul.f32 %v28, %v35
  %v37 = vmul.f32 %v34, %v35
  %v38 = vmul.f32 %v18, %v18
  %v39 = vmul.f32 %v19, %v19
  %v40 = vrot.slane %v38, 4
  %v41 = vadd.f32 %v38, %v40
  %v42 = vrot.slane %v41, 2
  %v43 = vadd.f32 %v41, %v42
  %v44 = vrot.slane %v43, 1
  %v45 = vadd.f32 %v43, %v44
  %v46 = vrot.slane %v39, 4
  %v47 = vadd.f32 %v39, %v46
  %v48 = vrot.slane %v47, 2
  %v49 = vadd.f32 %v47, %v48
  %v50 = vrot.slane %v49, 1
  %v51 = vadd.f32 %v49, %v50
  %v52 = vmul.f32 %v45, %v35
  %v53 = vmul.f32 %v51, %v35
  %v54 = vmul.f32 %v36, %v36
  %v55 = vmul.f32 %v37, %v37
  %v56 = vsub.f32 %v52, %v54
  %v57 = vsub.f32 %v53, %v55
  %v58 = vsub.f32 %v18, %v36
  %v59 = vsub.f32 %v19, %v37
  %v60 = vadd.f32 %v56, 1e-05
  %v61 = vadd.f32 %v57, 1e-05
  %v62 = vrsqrt.pop %v60
  %v63 = vrsqrt.pop %v61
  %v64 = vmul.f32 %v58, %v62
  %v65 = vmul.f32 %v59, %v63
  %67 = vset.pattern.permute.xlu0 0
  %68 = vperm.xlu0 %67, %v20
  %v69 = vpop.permute.xlu0 %68
  %v71 = vmul.f32 %v64, %v69
  %v72 = vmul.f32 %v65, %v69
  %73 = vset.pattern.permute.xlu0 1
  %74 = vperm.xlu0 %73, %v20
  %v75 = vpop.permute.xlu0 %74
  %v77 = vadd.f32 %v71, %v75
  %v78 = vadd.f32 %v72, %v75
  %v79 = vxor.u32 %v77, 2147483648
  %v80 = vxor.u32 %v78, 2147483648
  %v81 = vmul.f32 %v79, 1.442695
  %v82 = vpow.pop %v81
  %v83 = vmul.f32 %v80, 1.442695
  %v84 = vpow.pop %v83
  %v85 = vadd.f32 %v82, 1.0
  %v86 = vadd.f32 %v84, 1.0
  %v87 = vrcp.pop %v85
  %v88 = vmul.f32 1.0, %v87
  %v89 = vrcp.pop %v86
  %v90 = vmul.f32 1.0, %v89
  %v91 = vmul.f32 %v77, %v88
  %v92 = vmul.f32 %v78, %v90
  %93 = vset.pattern.permute.xlu0 3
  %94 = vperm.xlu0 %93, %v20
  %v95 = vpop.permute.xlu0 %94
  %97 = vrot.lane.b32.xlu0 %v20, 120
  %v98 = vpop.permute.xlu0 %97
  %vm99 = vcmask 64512
  %v100 = vsel %vm99, %v98, 0
  %102 = vmatprep.subr.mxu0 %v92
  %103 = vmatpush1.msra.mxu0 %v91
  %104 = vmatprep.subr.mxu0 0.0
  %105 = vmatpush1.msra.mxu0 0.0
  %106 = vmatprep.subr.mxu0 0.0
  %107 = vmatpush1.msra.mxu0 0.0
  %108 = vmatprep.subr.mxu0 0.0
  %109 = vmatpush1.msra.mxu0 0.0
  %110 = vmatprep.subr.mxu0 0.0
  %111 = vmatpush1.msra.mxu0 0.0
  %112 = vmatprep.subr.mxu0 0.0
  %113 = vmatpush1.msra.mxu0 0.0
  %114 = vmatprep.subr.mxu0 0.0
  %115 = vmatpush1.msra.mxu0 0.0
  %116 = vmatprep.subr.mxu0 0.0
  %117 = vmatpush1.msra.mxu0 0.0
  %118 = vmatprep.subr.mxu0 0.0
  %119 = vmatpush1.msra.mxu0 0.0
  %120 = vmatprep.subr.mxu0 0.0
  %121 = vmatpush1.msra.mxu0 0.0
  %122 = vmatprep.subr.mxu0 0.0
  %123 = vmatpush1.msra.mxu0 0.0
  %124 = vmatprep.subr.mxu0 0.0
  %125 = vmatpush1.msra.mxu0 0.0
  %126 = vmatprep.subr.mxu0 0.0
  %127 = vmatpush1.msra.mxu0 0.0
  %128 = vmatprep.subr.mxu0 0.0
  %129 = vmatpush1.msra.mxu0 0.0
  %130 = vmatprep.subr.mxu0 0.0
  %131 = vmatpush1.msra.mxu0 0.0
  %132 = vmatprep.subr.mxu0 0.0
  %133 = vmatpush1.msra.mxu0 0.0
  %134 = vmatprep.subr.mxu0 0.0
  %135 = vmatpush1.msra.mxu0 0.0
  %136 = vmatprep.subr.mxu0 0.0
  %137 = vmatpush1.msra.mxu0 0.0
  %138 = vmatprep.subr.mxu0 0.0
  %139 = vmatpush1.msra.mxu0 0.0
  %140 = vmatprep.subr.mxu0 0.0
  %141 = vmatpush1.msra.mxu0 0.0
  %142 = vmatprep.subr.mxu0 0.0
  %143 = vmatpush1.msra.mxu0 0.0
  %144 = vmatprep.subr.mxu0 0.0
  %145 = vmatpush1.msra.mxu0 0.0
  %146 = vmatprep.subr.mxu0 0.0
  %147 = vmatpush1.msra.mxu0 0.0
  %148 = vmatprep.subr.mxu0 0.0
  %149 = vmatpush1.msra.mxu0 0.0
  %150 = vmatprep.subr.mxu0 0.0
  %151 = vmatpush1.msra.mxu0 0.0
  %152 = vmatprep.subr.mxu0 0.0
  %153 = vmatpush1.msra.mxu0 0.0
  %154 = vmatprep.subr.mxu0 0.0
  %155 = vmatpush1.msra.mxu0 0.0
  %156 = vmatprep.subr.mxu0 0.0
  %157 = vmatpush1.msra.mxu0 0.0
  %158 = vmatprep.subr.mxu0 0.0
  %159 = vmatpush1.msra.mxu0 0.0
  %160 = vmatprep.subr.mxu0 0.0
  %161 = vmatpush1.msra.mxu0 0.0
  %162 = vmatprep.subr.mxu0 0.0
  %163 = vmatpush1.msra.mxu0 0.0
  %164 = vmatprep.subr.mxu0 0.0
  %165 = vmatpush1.msra.mxu0 0.0
  %166 = vmatprep.mubr.f32.mxu0 0.0
  %167 = vmatmul.mubr.f32.gmra.mrb[0].mxu0 %v100
  %v168 = vpop.f32.mrb[0].mxu0
  %v169 = vadd.f32 %v95, %v168
  %v170 = vpop.f32.mrb[0].mxu0
  %v171 = vadd.f32 %v95, %v170
  %172 = vdwg.mxu0
  %v173 = vxor.u32 %v169, 2147483648
  %v174 = vxor.u32 %v171, 2147483648
  %v175 = vmul.f32 %v173, 1.442695
  %v176 = vpow.pop %v175
  %v177 = vmul.f32 %v174, 1.442695
  %v178 = vpow.pop %v177
  %v179 = vadd.f32 %v176, 1.0
  %v180 = vadd.f32 %v178, 1.0
  %v181 = vrcp.pop %v179
  %v182 = vmul.f32 1.0, %v181
  %v183 = vrcp.pop %v180
  %v184 = vmul.f32 1.0, %v183
  %v185 = vmul.f32 %v169, %v182
  %v186 = vmul.f32 %v171, %v184
  %v187 = vpack.c.bf16 %v185, %v185
  %v188 = vpack.c.bf16 %v186, %v186
  %v189 = vld [vmem:[%s2] sm:$0xf]
  %v190 = vld [vmem:[%s2 + $0x4] sm:$0xf]
  %v191 = vld [vmem:[%s2 + $0x8] sm:$0xf]
  %v192 = vld [vmem:[%s2 + $0xc] sm:$0xf]
  %v193 = vld [vmem:[%s2 + $0x10] sm:$0xf]
  %v194 = vld [vmem:[%s2 + $0x14] sm:$0xf]
  %v195 = vld [vmem:[%s2 + $0x18] sm:$0xf]
  %v196 = vld [vmem:[%s2 + $0x1c] sm:$0xf]
  %v197 = vld [vmem:[%s2 + $0x20] sm:$0xf]
  %v198 = vld [vmem:[%s2 + $0x24] sm:$0xf]
  %v199 = vld [vmem:[%s2 + $0x28] sm:$0xf]
  %v200 = vld [vmem:[%s2 + $0x2c] sm:$0xf]
  %v201 = vld [vmem:[%s2 + $0x30] sm:$0xf]
  %v202 = vld [vmem:[%s2 + $0x34] sm:$0xf]
  %v203 = vld [vmem:[%s2 + $0x38] sm:$0xf]
  %v204 = vld [vmem:[%s2 + $0x3c] sm:$0xf]
  %v205 = vld [vmem:[%s2 + $0x40] sm:$0xf]
  %v206 = vld [vmem:[%s2 + $0x44] sm:$0xf]
  %v207 = vld [vmem:[%s2 + $0x48] sm:$0xf]
  %v208 = vld [vmem:[%s2 + $0x4c] sm:$0xf]
  %v209 = vld [vmem:[%s2 + $0x50] sm:$0xf]
  %v210 = vld [vmem:[%s2 + $0x54] sm:$0xf]
  %v211 = vld [vmem:[%s2 + $0x58] sm:$0xf]
  %v212 = vld [vmem:[%s2 + $0x5c] sm:$0xf]
  %v213 = vld [vmem:[%s2 + $0x60] sm:$0xf]
  %v214 = vld [vmem:[%s2 + $0x64] sm:$0xf]
  %v215 = vld [vmem:[%s2 + $0x68] sm:$0xf]
  %v216 = vld [vmem:[%s2 + $0x6c] sm:$0xf]
  %v217 = vld [vmem:[%s2 + $0x70] sm:$0xf]
  %v218 = vld [vmem:[%s2 + $0x74] sm:$0xf]
  %v219 = vld [vmem:[%s2 + $0x78] sm:$0xf]
  %v220 = vld [vmem:[%s2 + $0x7c] sm:$0xf]
  %v253 = vunpack.c.l.b16 %v189
  %v254 = vunpack.c.l.b16 %v190
  %v255 = vunpack.c.l.b16 %v191
  %v256 = vunpack.c.l.b16 %v192
  %v257 = vunpack.c.l.b16 %v193
  %v258 = vunpack.c.l.b16 %v194
  %v259 = vunpack.c.l.b16 %v195
  %v260 = vunpack.c.l.b16 %v196
  %v261 = vunpack.c.l.b16 %v197
  %v262 = vunpack.c.l.b16 %v198
  %v263 = vunpack.c.l.b16 %v199
  %v264 = vunpack.c.l.b16 %v200
  %v265 = vunpack.c.l.b16 %v201
  %v266 = vunpack.c.l.b16 %v202
  %v267 = vunpack.c.l.b16 %v203
  %v268 = vunpack.c.l.b16 %v204
  %v269 = vunpack.c.l.b16 %v205
  %v270 = vunpack.c.l.b16 %v206
  %v271 = vunpack.c.l.b16 %v207
  %v272 = vunpack.c.l.b16 %v208
  %v273 = vunpack.c.l.b16 %v209
  %v274 = vunpack.c.l.b16 %v210
  %v275 = vunpack.c.l.b16 %v211
  %v276 = vunpack.c.l.b16 %v212
  %v277 = vunpack.c.l.b16 %v213
  %v278 = vunpack.c.l.b16 %v214
  %v279 = vunpack.c.l.b16 %v215
  %v280 = vunpack.c.l.b16 %v216
  %v281 = vunpack.c.l.b16 %v217
  %v282 = vunpack.c.l.b16 %v218
  %v283 = vunpack.c.l.b16 %v219
  %v284 = vunpack.c.l.b16 %v220
  %v285 = vpack.c.b16 %v254, %v253
  %v286 = vpack.c.b16 %v256, %v255
  %v287 = vpack.c.b16 %v258, %v257
  %v288 = vpack.c.b16 %v260, %v259
  %v289 = vpack.c.b16 %v262, %v261
  %v290 = vpack.c.b16 %v264, %v263
  %v291 = vpack.c.b16 %v266, %v265
  %v292 = vpack.c.b16 %v268, %v267
  %v293 = vpack.c.b16 %v270, %v269
  %v294 = vpack.c.b16 %v272, %v271
  %v295 = vpack.c.b16 %v274, %v273
  %v296 = vpack.c.b16 %v276, %v275
  %v297 = vpack.c.b16 %v278, %v277
  %v298 = vpack.c.b16 %v280, %v279
  %v299 = vpack.c.b16 %v282, %v281
  %v300 = vpack.c.b16 %v284, %v283
  %317 = vmatprep.subr.bf16.mxu0 0
  %318 = vmatpush1.bf16.msra.mxu0 %v285
  %319 = vmatprep.subr.bf16.mxu0 0
  %320 = vmatpush1.bf16.msra.mxu0 %v286
  %321 = vmatprep.subr.bf16.mxu0 0
  %322 = vmatpush1.bf16.msra.mxu0 %v287
  %323 = vmatprep.subr.bf16.mxu0 0
  %324 = vmatpush1.bf16.msra.mxu0 %v288
  %325 = vmatprep.subr.bf16.mxu0 0
  %326 = vmatpush1.bf16.msra.mxu0 %v289
  %327 = vmatprep.subr.bf16.mxu0 0
  %328 = vmatpush1.bf16.msra.mxu0 %v290
  %329 = vmatprep.subr.bf16.mxu0 0
  %330 = vmatpush1.bf16.msra.mxu0 %v291
  %331 = vmatprep.subr.bf16.mxu0 0
  %332 = vmatpush1.bf16.msra.mxu0 %v292
  %333 = vmatprep.subr.bf16.mxu0 0
  %334 = vmatpush1.bf16.msra.mxu0 %v293
  %335 = vmatprep.subr.bf16.mxu0 0
  %336 = vmatpush1.bf16.msra.mxu0 %v294
  %337 = vmatprep.subr.bf16.mxu0 0
  %338 = vmatpush1.bf16.msra.mxu0 %v295
  %339 = vmatprep.subr.bf16.mxu0 0
  %340 = vmatpush1.bf16.msra.mxu0 %v296
  %341 = vmatprep.subr.bf16.mxu0 0
  %342 = vmatpush1.bf16.msra.mxu0 %v297
  %343 = vmatprep.subr.bf16.mxu0 0
  %344 = vmatpush1.bf16.msra.mxu0 %v298
  %345 = vmatprep.subr.bf16.mxu0 0
  %346 = vmatpush1.bf16.msra.mxu0 %v299
  %347 = vmatprep.subr.bf16.mxu0 0
  %348 = vmatpush1.bf16.msra.mxu0 %v300
  %349 = vmatprep.mubr.bf16.mxu0 %v188
  %350 = vmatmul.mubr.bf16.gmra.mrb[0].mxu0 %v187
  %v351 = vpop.f32.mrb[0].mxu0
  %v352 = vadd.f32 0.0, %v351
  %v353 = vpop.f32.mrb[0].mxu0
  %v354 = vpop.f32.mrb[0].mxu0
  %v355 = vpop.f32.mrb[0].mxu0
  %356 = vdwg.mxu0
  %v357 = vlaneseq
  %v358 = vshrl.u32 %v357, 7
  %v359 = vsub.s32 0, %v358
  %v360 = vrot.slane %v352, %v359
  %v361 = vmul.f32 %v21, %v360
  %v362 = vlaneseq
  %v363 = vshrl.u32 %v362, 7
  %v364 = vsub.s32 1, %v363
  %v365 = vrot.slane %v352, %v364
  %v366 = vmul.f32 %v21, %v365
  %v367 = vlaneseq
  %v368 = vshrl.u32 %v367, 7
  %v369 = vsub.s32 2, %v368
  %v370 = vrot.slane %v352, %v369
  %v371 = vmul.f32 %v22, %v370
  %v372 = vlaneseq
  %v373 = vshrl.u32 %v372, 7
  %v374 = vsub.s32 3, %v373
  %v375 = vrot.slane %v352, %v374
  %v376 = vmul.f32 %v22, %v375
  %v378 = vrot.slane %v366, 4
  %v380 = vadd.f32 %v361, %v378
  %v382 = vrot.slane %v376, 4
  %v384 = vadd.f32 %v371, %v382
  %v385 = vadd.f32 %v380, %v384
  %v386 = vpack.c.bf16 %v385, %v385
  %v387 = vld [vmem:[%s3] sm:$0xff]
  %v388 = vld [vmem:[%s3 + $0x8] sm:$0xff]
  %v389 = vld [vmem:[%s3 + $0x10] sm:$0xff]
  %v390 = vld [vmem:[%s3 + $0x18] sm:$0xff]
  %v391 = vld [vmem:[%s3 + $0x20] sm:$0xff]
  %v392 = vld [vmem:[%s3 + $0x28] sm:$0xff]
  %v393 = vld [vmem:[%s3 + $0x30] sm:$0xff]
  %v394 = vld [vmem:[%s3 + $0x38] sm:$0xff]
  %v403 = vunpack.c.l.b16 %v387
  %v404 = vunpack.c.h.b16 %v387
  %v405 = vunpack.c.l.b16 %v388
  %v406 = vunpack.c.h.b16 %v388
  %v407 = vunpack.c.l.b16 %v389
  %v408 = vunpack.c.h.b16 %v389
  %v409 = vunpack.c.l.b16 %v390
  %v410 = vunpack.c.h.b16 %v390
  %v411 = vunpack.c.l.b16 %v391
  %v412 = vunpack.c.h.b16 %v391
  %v413 = vunpack.c.l.b16 %v392
  %v414 = vunpack.c.h.b16 %v392
  %v415 = vunpack.c.l.b16 %v393
  %v416 = vunpack.c.h.b16 %v393
  %v417 = vunpack.c.l.b16 %v394
  %v418 = vunpack.c.h.b16 %v394
  %v419 = vpack.c.b16 %v405, %v403
  %v420 = vpack.c.b16 %v406, %v404
  %v421 = vpack.c.b16 %v409, %v407
  %v422 = vpack.c.b16 %v410, %v408
  %v423 = vpack.c.b16 %v413, %v411
  %v424 = vpack.c.b16 %v414, %v412
  %v425 = vpack.c.b16 %v417, %v415
  %v426 = vpack.c.b16 %v418, %v416
  %vm435 = vcmask 523264
  %v437 = vsel %vm435, %v386, 0
  %439 = vmatprep.subr.bf16.mxu0 %v420
  %440 = vmatpush1.bf16.msra.mxu0 %v419
  %441 = vmatprep.subr.bf16.mxu0 %v422
  %442 = vmatpush1.bf16.msra.mxu0 %v421
  %443 = vmatprep.subr.bf16.mxu0 %v424
  %444 = vmatpush1.bf16.msra.mxu0 %v423
  %445 = vmatprep.subr.bf16.mxu0 %v426
  %446 = vmatpush1.bf16.msra.mxu0 %v425
  %447 = vmatprep.subr.bf16.mxu0 0
  %448 = vmatpush1.bf16.msra.mxu0 0
  %449 = vmatprep.subr.bf16.mxu0 0
  %450 = vmatpush1.bf16.msra.mxu0 0
  %451 = vmatprep.subr.bf16.mxu0 0
  %452 = vmatpush1.bf16.msra.mxu0 0
  %453 = vmatprep.subr.bf16.mxu0 0
  %454 = vmatpush1.bf16.msra.mxu0 0
  %455 = vmatprep.subr.bf16.mxu0 0
  %456 = vmatpush1.bf16.msra.mxu0 0
  %457 = vmatprep.subr.bf16.mxu0 0
  %458 = vmatpush1.bf16.msra.mxu0 0
  %459 = vmatprep.subr.bf16.mxu0 0
  %460 = vmatpush1.bf16.msra.mxu0 0
  %461 = vmatprep.subr.bf16.mxu0 0
  %462 = vmatpush1.bf16.msra.mxu0 0
  %463 = vmatprep.subr.bf16.mxu0 0
  %464 = vmatpush1.bf16.msra.mxu0 0
  %465 = vmatprep.subr.bf16.mxu0 0
  %466 = vmatpush1.bf16.msra.mxu0 0
  %467 = vmatprep.subr.bf16.mxu0 0
  %468 = vmatpush1.bf16.msra.mxu0 0
  %469 = vmatprep.subr.bf16.mxu0 0
  %470 = vmatpush1.bf16.msra.mxu0 0
  %471 = vmatprep.mubr.bf16.mxu0 0
  %472 = vmatmul.mubr.bf16.gmra.mrb[0].mxu0 %v437
  %v473 = vpop.f32.mrb[0].mxu0
  %v474 = vadd.f32 0.0, %v473
  %v475 = vpop.f32.mrb[0].mxu0
  %v476 = vadd.f32 0.0, %v475
  %v477 = vpop.f32.mrb[0].mxu0
  %v478 = vpop.f32.mrb[0].mxu0
  %479 = vdwg.mxu0
  %v480 = vxor.u32 %v474, 2147483648
  %v481 = vxor.u32 %v476, 2147483648
  %v482 = vmul.f32 %v480, 1.442695
  %v483 = vpow.pop %v482
  %v484 = vmul.f32 %v481, 1.442695
  %v485 = vpow.pop %v484
  %v486 = vadd.f32 %v483, 1.0
  %v487 = vadd.f32 %v485, 1.0
  %v488 = vrcp.pop %v486
  %v489 = vmul.f32 1.0, %v488
  %v490 = vrcp.pop %v487
  %v491 = vmul.f32 1.0, %v490
  %v492 = vmul.f32 %v474, %v489
  %v493 = vmul.f32 %v476, %v491
  %494 = vset.pattern.permute.xlu0 2
  %495 = vperm.xlu0 %494, %v20
  %v496 = vpop.permute.xlu0 %495
  %498 = vrot.lane.b32.xlu0 %v20, 112
  %v499 = vpop.permute.xlu0 %498
  %vm500 = vcmask 31744
  %v501 = vsel %vm500, %v499, 0
  %vm503 = vcmask 1043456
  %v505 = vsel %vm503, %v492, 0
  %v508 = vsel %vm503, %v493, 0
  %510 = vmatprep.subr.mxu0 %v508
  %511 = vmatpush1.msra.mxu0 %v505
  %512 = vmatprep.subr.mxu0 0.0
  %513 = vmatpush1.msra.mxu0 0.0
  %514 = vmatprep.subr.mxu0 0.0
  %515 = vmatpush1.msra.mxu0 0.0
  %516 = vmatprep.subr.mxu0 0.0
  %517 = vmatpush1.msra.mxu0 0.0
  %518 = vmatprep.subr.mxu0 0.0
  %519 = vmatpush1.msra.mxu0 0.0
  %520 = vmatprep.subr.mxu0 0.0
  %521 = vmatpush1.msra.mxu0 0.0
  %522 = vmatprep.subr.mxu0 0.0
  %523 = vmatpush1.msra.mxu0 0.0
  %524 = vmatprep.subr.mxu0 0.0
  %525 = vmatpush1.msra.mxu0 0.0
  %526 = vmatprep.subr.mxu0 0.0
  %527 = vmatpush1.msra.mxu0 0.0
  %528 = vmatprep.subr.mxu0 0.0
  %529 = vmatpush1.msra.mxu0 0.0
  %530 = vmatprep.subr.mxu0 0.0
  %531 = vmatpush1.msra.mxu0 0.0
  %532 = vmatprep.subr.mxu0 0.0
  %533 = vmatpush1.msra.mxu0 0.0
  %534 = vmatprep.subr.mxu0 0.0
  %535 = vmatpush1.msra.mxu0 0.0
  %536 = vmatprep.subr.mxu0 0.0
  %537 = vmatpush1.msra.mxu0 0.0
  %538 = vmatprep.subr.mxu0 0.0
  %539 = vmatpush1.msra.mxu0 0.0
  %540 = vmatprep.subr.mxu0 0.0
  %541 = vmatpush1.msra.mxu0 0.0
  %542 = vmatprep.subr.mxu0 0.0
  %543 = vmatpush1.msra.mxu0 0.0
  %544 = vmatprep.subr.mxu0 0.0
  %545 = vmatpush1.msra.mxu0 0.0
  %546 = vmatprep.subr.mxu0 0.0
  %547 = vmatpush1.msra.mxu0 0.0
  %548 = vmatprep.subr.mxu0 0.0
  %549 = vmatpush1.msra.mxu0 0.0
  %550 = vmatprep.subr.mxu0 0.0
  %551 = vmatpush1.msra.mxu0 0.0
  %552 = vmatprep.subr.mxu0 0.0
  %553 = vmatpush1.msra.mxu0 0.0
  %554 = vmatprep.subr.mxu0 0.0
  %555 = vmatpush1.msra.mxu0 0.0
  %556 = vmatprep.subr.mxu0 0.0
  %557 = vmatpush1.msra.mxu0 0.0
  %558 = vmatprep.subr.mxu0 0.0
  %559 = vmatpush1.msra.mxu0 0.0
  %560 = vmatprep.subr.mxu0 0.0
  %561 = vmatpush1.msra.mxu0 0.0
  %562 = vmatprep.subr.mxu0 0.0
  %563 = vmatpush1.msra.mxu0 0.0
  %564 = vmatprep.subr.mxu0 0.0
  %565 = vmatpush1.msra.mxu0 0.0
  %566 = vmatprep.subr.mxu0 0.0
  %567 = vmatpush1.msra.mxu0 0.0
  %568 = vmatprep.subr.mxu0 0.0
  %569 = vmatpush1.msra.mxu0 0.0
  %570 = vmatprep.subr.mxu0 0.0
  %571 = vmatpush1.msra.mxu0 0.0
  %572 = vmatprep.subr.mxu0 0.0
  %573 = vmatpush1.msra.mxu0 0.0
  %574 = vmatprep.mubr.f32.mxu0 0.0
  %575 = vmatmul.mubr.f32.gmra.mrb[0].mxu0 %v501
  %v576 = vpop.f32.mrb[0].mxu0
  %v577 = vadd.f32 %v496, %v576
  %v578 = vpop.f32.mrb[0].mxu0
  %v579 = vadd.f32 %v496, %v578
  %580 = vdwg.mxu0
  %v581 = vadd.f32 %v18, %v577
  %v582 = vadd.f32 %v19, %v579
  %583 = vst [vmem:[%s4] sm:$0xff] %v581
  %584 = vst [vmem:[%s4 + $0x8] sm:$0xff] %v582
  // Predicated region
  $region18: #{sh_block_forward.1} parent=0 // pred_check
    _
  $region19: #{sh_block_forward.1} parent=0 // pred_check_branch
    %586 = sbr.rel (0) target = $region21
  $region20: #{sh_block_forward.1} parent=0 // pred_region
    _
  $region21: #{sh_block_forward.1} parent=0 // pred_fallthru
    _
  // Predicated region
  $region22: #{sh_block_forward.1} parent=0 // pred_check
    _
  $region23: #{sh_block_forward.1} parent=0 // pred_check_branch
    %588 = sbr.rel (0) target = $region25
  $region24: #{sh_block_forward.1} parent=0 // pred_region
    _
  $region25: #{sh_block_forward.1} parent=0 // pred_fallthru
    _

</llo_original>
